<compile_context>
chip_gen: v5e
topology: v5e:2x2
jax: 0.10.0
libtpu: 0.0.40
codegen_flags: <defaults>
</compile_context>

<pallas_src>
import functools

import numpy as np
import jax
import jax.numpy as jnp
from jax.experimental import pallas as pl
from jax.experimental.pallas import tpu as pltpu

_SQRT1_2 = np.float32(1.0 / np.sqrt(2.0))


def _round_up(x, m):
    return (x + m - 1) // m * m


def _choose_tile_b(B, H, itemsize=4):
    """VMEM-budget-aware batch tile.

    Targets ~1 MiB per [tile_b, H] input buffer (measured sweet spot for
    streaming kernels), keeps >= 2 grid steps when B allows it (so v7x's
    second TensorCore gets work and double-buffering overlaps DMA/compute),
    and rounds to the sublane multiple for the streamed dtype.
    """
    mult = {4: 8, 2: 16, 1: 32}.get(itemsize, 8)
    if B <= 2 * mult:
        return B                                   # single tiny block
    target_rows = (1 << 20) // max(1, H * itemsize)
    tile = max(mult, min(4096, target_rows))       # cap keeps VMEM well < 32 MiB
    tile = min(tile, -(-B // 2))                   # >= 2 grid steps
    tile = _round_up(tile, mult)
    return tile


def _layernorm(x, gamma, beta, eps=1e-5):
    mu = jnp.mean(x, axis=-1, keepdims=True)
    var = jnp.mean((x - mu) ** 2, axis=-1, keepdims=True)
    return (x - mu) * jax.lax.rsqrt(var + eps) * gamma + beta


def _fusion_kernel(high_ref, low_ref, rep_ref,
                   wf1h_ref, wf1l_ref, wph_ref, wpl_ref,
                   sh_ref, sH_ref,
                   out_ref, repw_ref, *, rep_weight, ln_eps=1e-5):
    f32 = jnp.float32
    high = high_ref[...].astype(f32)          # [tb, H]
    low = low_ref[...].astype(f32)            # [tb, H]
    rep = rep_ref[...].astype(f32)            # [tb, 1]

    # packed small parameters (see _prepare_kernel_params)
    wf1_r = sh_ref[0:1, :]                    # [1, H//2]
    bf1 = sh_ref[1:2, :]                      # [1, H//2]
    wf2_t = sh_ref[2:3, :]                    # [1, H//2]
    bf2 = sh_ref[3:4, 0:1]                    # [1, 1]
    bp = sH_ref[0:1, :]                       # [1, H]
    gamma = sH_ref[1:2, :]                    # [1, H]
    beta = sH_ref[2:3, :]                     # [1, H]

    # ---- fusion_network Linear(2H+1 -> H//2): concat folded into splits ----
    h = (jnp.dot(high, wf1h_ref[...], preferred_element_type=f32)
         + jnp.dot(low, wf1l_ref[...], preferred_element_type=f32)
         + rep * wf1_r                        # [tb,1] * [1,H//2]
         + bf1)
    # exact GELU (torch nn.GELU default).  TODO(synk): tanh-approx GELU would
    # move this off the VALU slot but exceeds the 2e-4 reference tolerance.
    h = 0.5 * h * (1.0 + jax.lax.erf(h * _SQRT1_2))

    # ---- Linear(H//2 -> 1) as a lane reduction, sigmoid via tanh (EUP) ----
    logit = jnp.sum(h * wf2_t, axis=-1, keepdims=True) + bf2     # [tb, 1]
    dyn = 0.5 * (jnp.tanh(0.5 * logit) + 1.0)                    # == sigmoid

    rep_w = rep_weight + (1.0 - rep_weight) * dyn                # [tb, 1]
    nov_w = 1.0 - rep_w

    # ---- final_projection Linear(2H -> H), concat folded + single-pass LN ----
    proj = (jnp.dot(rep_w * high, wph_ref[...], preferred_element_type=f32)
            + jnp.dot(nov_w * low, wpl_ref[...], preferred_element_type=f32)
            + bp)
    mu = jnp.mean(proj, axis=-1, keepdims=True)
    ms = jnp.mean(proj * proj, axis=-1, keepdims=True)
    var = ms - mu * mu
    out = (proj - mu) * jax.lax.rsqrt(var + ln_eps) * gamma + beta

    out_ref[...] = out.astype(out_ref.dtype)
    repw_ref[...] = rep_w


def dtw_repetition_aware_recommender(high, low, rep_scores, kparams, *,
                                     rep_weight=0.7, tile_b=None,
                                     stream_dtype=None):
    """Pallas forward for DTWRepetitionAwareRecommender (default config)."""
    B, H = high.shape
    Hh = kparams["Wf1_h"].shape[1]

    if stream_dtype is not None:
        # Optional bf16 streaming of the HBM-bound activations (~1/3 less input
        # traffic).  Looser tolerance than the f32 default — validate per use.
        high = high.astype(stream_dtype)
        low = low.astype(stream_dtype)

    if tile_b is None:
        tile_b = _choose_tile_b(B, H, jnp.dtype(high.dtype).itemsize)
    grid = (pl.cdiv(B, tile_b),)   # ragged last block handled by Pallas

    row_spec = pl.BlockSpec((tile_b, H), lambda i: (i, 0))
    col_spec = pl.BlockSpec((tile_b, 1), lambda i: (i, 0))

    def wspec(shape):
        # Constant index_map -> parameters stay VMEM-resident across the grid.
        # TODO(synk): for very large H, single-buffer the [H,H] weight halves
        # (pl.Buffered(1)) or store them bf16 to fit v7x's 64 MiB VMEM.
        return pl.BlockSpec(shape, lambda i: (0, 0))

    kernel = functools.partial(_fusion_kernel, rep_weight=float(rep_weight))
    out, rep_w = pl.pallas_call(
        kernel,
        grid=grid,
        in_specs=[row_spec, row_spec, col_spec,
                  wspec((H, Hh)), wspec((H, Hh)),
                  wspec((H, H)), wspec((H, H)),
                  wspec((4, Hh)), wspec((3, H))],
        out_specs=(row_spec, col_spec),
        out_shape=(jax.ShapeDtypeStruct((B, H), jnp.float32),
                   jax.ShapeDtypeStruct((B, 1), jnp.float32)),
        compiler_params=pltpu.CompilerParams(
            dimension_semantics=("parallel",),
            vmem_limit_bytes=32 * 1024 * 1024),
    )(high, low, rep_scores,
      kparams["Wf1_h"], kparams["Wf1_l"],
      kparams["Wp_h"], kparams["Wp_l"],
      kparams["small_hh"], kparams["small_h"])

    nov_w = 1.0 - rep_w
    return out, rep_w, nov_w


# ---------------- parameters (torch-style Linear init) ----------------
def _init_params(key, H):
    Hh = H // 2
    ks = jax.random.split(key, 6)

    def u(k, shape, fan_in):
        b = 1.0 / np.sqrt(fan_in)
        return jax.random.uniform(k, shape, jnp.float32, -b, b)

    return {
        "Wf1": u(ks[0], (2 * H + 1, Hh), 2 * H + 1),
        "bf1": u(ks[1], (1, Hh), 2 * H + 1),
        "Wf2": u(ks[2], (Hh, 1), Hh),
        "bf2": u(ks[3], (1, 1), Hh),
        "Wp":  u(ks[4], (2 * H, H), 2 * H),
        "bp":  u(ks[5], (1, H), 2 * H),
        "gamma": jnp.ones((1, H), jnp.float32),
        "beta":  jnp.zeros((1, H), jnp.float32),
    }


def _prepare_kernel_params(p, H):
    """Split concat-facing weights and pack the small vectors into two stacks."""
    Hh = H // 2
    small_hh = jnp.concatenate([
        p["Wf1"][2 * H:2 * H + 1],                       # row 0: wf1_r  [1,Hh]
        p["bf1"],                                        # row 1: bf1    [1,Hh]
        p["Wf2"].T,                                      # row 2: wf2_t  [1,Hh]
        jnp.pad(p["bf2"], ((0, 0), (0, Hh - 1))),        # row 3: bf2 @ [3,0]
    ], axis=0)                                           # [4, Hh]
    small_h = jnp.concatenate([p["bp"], p["gamma"], p["beta"]], axis=0)  # [3, H]
    return {
        "Wf1_h": p["Wf1"][:H],            # [H, H//2]
        "Wf1_l": p["Wf1"][H:2 * H],       # [H, H//2]
        "Wp_h":  p["Wp"][:H],             # [H, H]
        "Wp_l":  p["Wp"][H:],             # [H, H]
        "small_hh": small_hh,
        "small_h": small_h,
    }


# ---------------- pure-JAX reference (mirrors the PyTorch forward) ----------------
def _reference(high, low, rep, p, rep_weight=0.7):
    fusion_input = jnp.concatenate([high, low, rep], axis=1)
    h = fusion_input @ p["Wf1"] + p["bf1"]
    h = jax.nn.gelu(h, approximate=False)
    dyn = jax.nn.sigmoid(h @ p["Wf2"] + p["bf2"])
    rep_w = rep_weight + (1.0 - rep_weight) * dyn
    nov_w = 1.0 - rep_w
    concat = jnp.concatenate([rep_w * high, nov_w * low], axis=1)
    proj = concat @ p["Wp"] + p["bp"]
    out = _layernorm(proj, p["gamma"], p["beta"])
    return out, rep_w, nov_w


def _check(got, ref, atol, rtol):
    for g, r in zip(got, ref):
        assert np.allclose(np.asarray(g), np.asarray(r), atol=atol, rtol=rtol)


if __name__ == "__main__":
    # TODO(synk): personalized_fusion=True and use_dtw_probe=True branches (off
    # by default in the module) are not implemented in the kernel.
    H = 32                              # embedding_dim
    key = jax.random.PRNGKey(0)
    kp, kdata = jax.random.split(key)
    params = _init_params(kp, H)
    kparams = _prepare_kernel_params(params, H)

    def make_inputs(k, B):
        kh, kl, kr = jax.random.split(k, 3)
        return (jax.random.normal(kh, (B, H), jnp.float32),
                jax.random.normal(kl, (B, H), jnp.float32),
                jax.random.uniform(kr, (B, 1), jnp.float32))

    # Small-batch case (single block).
    k1, k2 = jax.random.split(kdata)
    high, low, rep_scores = make_inputs(k1, 8)
    got = dtw_repetition_aware_recommender(high, low, rep_scores, kparams)
    jax.block_until_ready(got)
    _check(got, _reference(high, low, rep_scores, params), 2e-4, 2e-4)

    # Larger batch: multi-step grid with a ragged last block (no padding copy).
    high2, low2, rep2 = make_inputs(k2, 200)
    got2 = dtw_repetition_aware_recommender(high2, low2, rep2, kparams)
    jax.block_until_ready(got2)
    _check(got2, _reference(high2, low2, rep2, params), 2e-4, 2e-4)

    # Optional bf16 activation streaming (looser tolerance by construction).
    got_bf = dtw_repetition_aware_recommender(high, low, rep_scores, kparams,
                                              stream_dtype=jnp.bfloat16)
    jax.block_until_ready(got_bf)
    _check(got_bf, _reference(high, low, rep_scores, params), 6e-2, 6e-2)

    print("KERNEL_OK")
</pallas_src>

<mosaic_0001>
module attributes {stable_mosaic.version = 11 : i64} {
  func.func @_fusion_kernel(%arg0: i32, %arg1: memref<8x32xf32, #tpu.memory_space<vmem>>, %arg2: memref<8x32xf32, #tpu.memory_space<vmem>>, %arg3: memref<8x1xf32, #tpu.memory_space<vmem>>, %arg4: memref<32x16xf32, #tpu.memory_space<vmem>>, %arg5: memref<32x16xf32, #tpu.memory_space<vmem>>, %arg6: memref<32x32xf32, #tpu.memory_space<vmem>>, %arg7: memref<32x32xf32, #tpu.memory_space<vmem>>, %arg8: memref<4x16xf32, #tpu.memory_space<vmem>>, %arg9: memref<3x32xf32, #tpu.memory_space<vmem>>, %arg10: memref<8x32xf32, #tpu.memory_space<vmem>>, %arg11: memref<8x1xf32, #tpu.memory_space<vmem>>) attributes {dimension_semantics = [#tpu.dimension_semantics<parallel>], iteration_bounds = array<i64: 1>, scalar_prefetch = 0 : i64, scratch_operands = 0 : i64, tpu.core_type = #tpu.core_type<tc>, window_params = [{transform_indices = @transform_0, window_bounds = array<i64: 8, 32>}, {transform_indices = @transform_1, window_bounds = array<i64: 8, 32>}, {transform_indices = @transform_2, window_bounds = array<i64: 8, 1>}, {pipeline_mode = #tpu.pipeline_mode<synchronous>, transform_indices = @transform_3, window_bounds = array<i64: 32, 16>}, {pipeline_mode = #tpu.pipeline_mode<synchronous>, transform_indices = @transform_4, window_bounds = array<i64: 32, 16>}, {pipeline_mode = #tpu.pipeline_mode<synchronous>, transform_indices = @transform_5, window_bounds = array<i64: 32, 32>}, {pipeline_mode = #tpu.pipeline_mode<synchronous>, transform_indices = @transform_6, window_bounds = array<i64: 32, 32>}, {pipeline_mode = #tpu.pipeline_mode<synchronous>, transform_indices = @transform_7, window_bounds = array<i64: 4, 16>}, {pipeline_mode = #tpu.pipeline_mode<synchronous>, transform_indices = @transform_8, window_bounds = array<i64: 3, 32>}, {transform_indices = @transform_9, window_bounds = array<i64: 8, 32>}, {transform_indices = @transform_10, window_bounds = array<i64: 8, 1>}]} {
    %c0 = arith.constant 0 : index
    %c0_0 = arith.constant 0 : index
    %0 = vector.load %arg1[%c0, %c0_0] : memref<8x32xf32, #tpu.memory_space<vmem>>, vector<8x32xf32>
    %c0_1 = arith.constant 0 : index
    %c0_2 = arith.constant 0 : index
    %1 = vector.load %arg2[%c0_1, %c0_2] : memref<8x32xf32, #tpu.memory_space<vmem>>, vector<8x32xf32>
    %c0_3 = arith.constant 0 : index
    %c0_4 = arith.constant 0 : index
    %2 = vector.load %arg3[%c0_3, %c0_4] : memref<8x1xf32, #tpu.memory_space<vmem>>, vector<8x1xf32>
    %c0_5 = arith.constant 0 : index
    %c0_6 = arith.constant 0 : index
    %3 = vector.load %arg8[%c0_5, %c0_6] : memref<4x16xf32, #tpu.memory_space<vmem>>, vector<1x16xf32>
    %c1 = arith.constant 1 : index
    %c0_7 = arith.constant 0 : index
    %4 = vector.load %arg8[%c1, %c0_7] : memref<4x16xf32, #tpu.memory_space<vmem>>, vector<1x16xf32>
    %c2 = arith.constant 2 : index
    %c0_8 = arith.constant 0 : index
    %5 = vector.load %arg8[%c2, %c0_8] : memref<4x16xf32, #tpu.memory_space<vmem>>, vector<1x16xf32>
    %c3 = arith.constant 3 : index
    %c0_9 = arith.constant 0 : index
    %6 = vector.load %arg8[%c3, %c0_9] : memref<4x16xf32, #tpu.memory_space<vmem>>, vector<1x1xf32>
    %c0_10 = arith.constant 0 : index
    %c0_11 = arith.constant 0 : index
    %7 = vector.load %arg9[%c0_10, %c0_11] : memref<3x32xf32, #tpu.memory_space<vmem>>, vector<1x32xf32>
    %c1_12 = arith.constant 1 : index
    %c0_13 = arith.constant 0 : index
    %8 = vector.load %arg9[%c1_12, %c0_13] : memref<3x32xf32, #tpu.memory_space<vmem>>, vector<1x32xf32>
    %c2_14 = arith.constant 2 : index
    %c0_15 = arith.constant 0 : index
    %9 = vector.load %arg9[%c2_14, %c0_15] : memref<3x32xf32, #tpu.memory_space<vmem>>, vector<1x32xf32>
    %c0_16 = arith.constant 0 : index
    %c0_17 = arith.constant 0 : index
    %10 = vector.load %arg4[%c0_16, %c0_17] : memref<32x16xf32, #tpu.memory_space<vmem>>, vector<32x16xf32>
    %cst = arith.constant dense<0.000000e+00> : vector<8x16xf32>
    %11 = tpu.matmul %0, %10, %cst {dimension_numbers = #tpu.dot_dimension_numbers<[1], [0], [0], [1], [0, 0, 1, 1], [], []>} : vector<8x32xf32>, vector<32x16xf32>, vector<8x16xf32> -> vector<8x16xf32>
    %c0_18 = arith.constant 0 : index
    %c0_19 = arith.constant 0 : index
    %12 = vector.load %arg5[%c0_18, %c0_19] : memref<32x16xf32, #tpu.memory_space<vmem>>, vector<32x16xf32>
    %cst_20 = arith.constant dense<0.000000e+00> : vector<8x16xf32>
    %13 = tpu.matmul %1, %12, %cst_20 {dimension_numbers = #tpu.dot_dimension_numbers<[1], [0], [0], [1], [0, 0, 1, 1], [], []>} : vector<8x32xf32>, vector<32x16xf32>, vector<8x16xf32> -> vector<8x16xf32>
    %14 = arith.addf %11, %13 : vector<8x16xf32>
    %15 = vector.broadcast %2 : vector<8x1xf32> to vector<8x16xf32>
    %16 = vector.broadcast %3 : vector<1x16xf32> to vector<8x16xf32>
    %17 = arith.mulf %15, %16 : vector<8x16xf32>
    %18 = arith.addf %14, %17 : vector<8x16xf32>
    %19 = vector.broadcast %4 : vector<1x16xf32> to vector<8x16xf32>
    %20 = arith.addf %18, %19 : vector<8x16xf32>
    %cst_21 = arith.constant 5.000000e-01 : f32
    %21 = vector.broadcast %cst_21 : f32 to vector<8x16xf32>
    %22 = arith.mulf %21, %20 : vector<8x16xf32>
    %cst_22 = arith.constant 0.707106769 : f32
    %23 = vector.broadcast %cst_22 : f32 to vector<8x16xf32>
    %24 = arith.mulf %20, %23 : vector<8x16xf32>
    %25 = math.erf %24 : vector<8x16xf32>
    %cst_23 = arith.constant 1.000000e+00 : f32
    %26 = vector.broadcast %cst_23 : f32 to vector<8x16xf32>
    %27 = arith.addf %26, %25 : vector<8x16xf32>
    %28 = arith.mulf %22, %27 : vector<8x16xf32>
    %29 = vector.broadcast %5 : vector<1x16xf32> to vector<8x16xf32>
    %30 = arith.mulf %28, %29 : vector<8x16xf32>
    %cst_24 = arith.constant dense<0.000000e+00> : vector<8xf32>
    %31 = vector.multi_reduction <add>, %30, %cst_24 [1] : vector<8x16xf32> to vector<8xf32>
    %32 = vector.shape_cast %31 : vector<8xf32> to vector<8x1xf32>
    %33 = vector.broadcast %6 : vector<1x1xf32> to vector<8x1xf32>
    %34 = arith.addf %32, %33 : vector<8x1xf32>
    %cst_25 = arith.constant 5.000000e-01 : f32
    %35 = vector.broadcast %cst_25 : f32 to vector<8x1xf32>
    %36 = arith.mulf %35, %34 : vector<8x1xf32>
    %37 = math.tanh %36 : vector<8x1xf32>
    %cst_26 = arith.constant 1.000000e+00 : f32
    %38 = vector.broadcast %cst_26 : f32 to vector<8x1xf32>
    %39 = arith.addf %37, %38 : vector<8x1xf32>
    %cst_27 = arith.constant 5.000000e-01 : f32
    %40 = vector.broadcast %cst_27 : f32 to vector<8x1xf32>
    %41 = arith.mulf %40, %39 : vector<8x1xf32>
    %cst_28 = arith.constant 3.000000e-01 : f32
    %42 = vector.broadcast %cst_28 : f32 to vector<8x1xf32>
    %43 = arith.mulf %42, %41 : vector<8x1xf32>
    %cst_29 = arith.constant 0.699999988 : f32
    %44 = vector.broadcast %cst_29 : f32 to vector<8x1xf32>
    %45 = arith.addf %44, %43 : vector<8x1xf32>
    %cst_30 = arith.constant 1.000000e+00 : f32
    %46 = vector.broadcast %cst_30 : f32 to vector<8x1xf32>
    %47 = arith.subf %46, %45 : vector<8x1xf32>
    %48 = vector.broadcast %45 : vector<8x1xf32> to vector<8x32xf32>
    %49 = arith.mulf %48, %0 : vector<8x32xf32>
    %c0_31 = arith.constant 0 : index
    %c0_32 = arith.constant 0 : index
    %50 = vector.load %arg6[%c0_31, %c0_32] : memref<32x32xf32, #tpu.memory_space<vmem>>, vector<32x32xf32>
    %cst_33 = arith.constant dense<0.000000e+00> : vector<8x32xf32>
    %51 = tpu.matmul %49, %50, %cst_33 {dimension_numbers = #tpu.dot_dimension_numbers<[1], [0], [0], [1], [0, 0, 1, 1], [], []>} : vector<8x32xf32>, vector<32x32xf32>, vector<8x32xf32> -> vector<8x32xf32>
    %52 = vector.broadcast %47 : vector<8x1xf32> to vector<8x32xf32>
    %53 = arith.mulf %52, %1 : vector<8x32xf32>
    %c0_34 = arith.constant 0 : index
    %c0_35 = arith.constant 0 : index
    %54 = vector.load %arg7[%c0_34, %c0_35] : memref<32x32xf32, #tpu.memory_space<vmem>>, vector<32x32xf32>
    %cst_36 = arith.constant dense<0.000000e+00> : vector<8x32xf32>
    %55 = tpu.matmul %53, %54, %cst_36 {dimension_numbers = #tpu.dot_dimension_numbers<[1], [0], [0], [1], [0, 0, 1, 1], [], []>} : vector<8x32xf32>, vector<32x32xf32>, vector<8x32xf32> -> vector<8x32xf32>
    %56 = arith.addf %51, %55 : vector<8x32xf32>
    %57 = vector.broadcast %7 : vector<1x32xf32> to vector<8x32xf32>
    %58 = arith.addf %56, %57 : vector<8x32xf32>
    %cst_37 = arith.constant dense<0.000000e+00> : vector<8xf32>
    %59 = vector.multi_reduction <add>, %58, %cst_37 [1] : vector<8x32xf32> to vector<8xf32>
    %60 = vector.shape_cast %59 : vector<8xf32> to vector<8x1xf32>
    %cst_38 = arith.constant 3.200000e+01 : f32
    %61 = vector.broadcast %cst_38 : f32 to vector<8x1xf32>
    %62 = arith.divf %60, %61 : vector<8x1xf32>
    %63 = arith.mulf %58, %58 : vector<8x32xf32>
    %cst_39 = arith.constant dense<0.000000e+00> : vector<8xf32>
    %64 = vector.multi_reduction <add>, %63, %cst_39 [1] : vector<8x32xf32> to vector<8xf32>
    %65 = vector.shape_cast %64 : vector<8xf32> to vector<8x1xf32>
    %cst_40 = arith.constant 3.200000e+01 : f32
    %66 = vector.broadcast %cst_40 : f32 to vector<8x1xf32>
    %67 = arith.divf %65, %66 : vector<8x1xf32>
    %68 = arith.mulf %62, %62 : vector<8x1xf32>
    %69 = arith.subf %67, %68 : vector<8x1xf32>
    %70 = vector.broadcast %62 : vector<8x1xf32> to vector<8x32xf32>
    %71 = arith.subf %58, %70 : vector<8x32xf32>
    %cst_41 = arith.constant 9.99999974E-6 : f32
    %72 = vector.broadcast %cst_41 : f32 to vector<8x1xf32>
    %73 = arith.addf %69, %72 : vector<8x1xf32>
    %74 = math.rsqrt %73 : vector<8x1xf32>
    %75 = vector.broadcast %74 : vector<8x1xf32> to vector<8x32xf32>
    %76 = arith.mulf %71, %75 : vector<8x32xf32>
    %77 = vector.broadcast %8 : vector<1x32xf32> to vector<8x32xf32>
    %78 = arith.mulf %76, %77 : vector<8x32xf32>
    %79 = vector.broadcast %9 : vector<1x32xf32> to vector<8x32xf32>
    %80 = arith.addf %78, %79 : vector<8x32xf32>
    %c0_42 = arith.constant 0 : index
    %c0_43 = arith.constant 0 : index
    %81 = vector.load %arg10[%c0_42, %c0_43] : memref<8x32xf32, #tpu.memory_space<vmem>>, vector<8x32xf32>
    tpu.vector_store %arg10[%c0_42, %c0_43], %80 {strides = array<i32>} : memref<8x32xf32, #tpu.memory_space<vmem>>, vector<8x32xf32>,
    %c0_44 = arith.constant 0 : index
    %c0_45 = arith.constant 0 : index
    %82 = vector.load %arg11[%c0_44, %c0_45] : memref<8x1xf32, #tpu.memory_space<vmem>>, vector<8x1xf32>
    tpu.vector_store %arg11[%c0_44, %c0_45], %45 {strides = array<i32>} : memref<8x1xf32, #tpu.memory_space<vmem>>, vector<8x1xf32>,
    return
  }
  func.func @transform_0(%arg0: i32) -> (i32, i32) {
    %c0_i32 = arith.constant 0 : i32
    %c0_i32_0 = arith.constant 0 : i32
    return %arg0, %c0_i32 : i32, i32
  }
  func.func @transform_1(%arg0: i32) -> (i32, i32) {
    %c0_i32 = arith.constant 0 : i32
    %c0_i32_0 = arith.constant 0 : i32
    return %arg0, %c0_i32 : i32, i32
  }
  func.func @transform_2(%arg0: i32) -> (i32, i32) {
    %c0_i32 = arith.constant 0 : i32
    %c0_i32_0 = arith.constant 0 : i32
    return %arg0, %c0_i32 : i32, i32
  }
  func.func @transform_3(%arg0: i32) -> (i32, i32) {
    %c0_i32 = arith.constant 0 : i32
    %c0_i32_0 = arith.constant 0 : i32
    %c0_i32_1 = arith.constant 0 : i32
    return %c0_i32, %c0_i32_0 : i32, i32
  }
  func.func @transform_4(%arg0: i32) -> (i32, i32) {
    %c0_i32 = arith.constant 0 : i32
    %c0_i32_0 = arith.constant 0 : i32
    %c0_i32_1 = arith.constant 0 : i32
    return %c0_i32, %c0_i32_0 : i32, i32
  }
  func.func @transform_5(%arg0: i32) -> (i32, i32) {
    %c0_i32 = arith.constant 0 : i32
    %c0_i32_0 = arith.constant 0 : i32
    %c0_i32_1 = arith.constant 0 : i32
    return %c0_i32, %c0_i32_0 : i32, i32
  }
  func.func @transform_6(%arg0: i32) -> (i32, i32) {
    %c0_i32 = arith.constant 0 : i32
    %c0_i32_0 = arith.constant 0 : i32
    %c0_i32_1 = arith.constant 0 : i32
    return %c0_i32, %c0_i32_0 : i32, i32
  }
  func.func @transform_7(%arg0: i32) -> (i32, i32) {
    %c0_i32 = arith.constant 0 : i32
    %c0_i32_0 = arith.constant 0 : i32
    %c0_i32_1 = arith.constant 0 : i32
    return %c0_i32, %c0_i32_0 : i32, i32
  }
  func.func @transform_8(%arg0: i32) -> (i32, i32) {
    %c0_i32 = arith.constant 0 : i32
    %c0_i32_0 = arith.constant 0 : i32
    %c0_i32_1 = arith.constant 0 : i32
    return %c0_i32, %c0_i32_0 : i32, i32
  }
  func.func @transform_9(%arg0: i32) -> (i32, i32) {
    %c0_i32 = arith.constant 0 : i32
    %c0_i32_0 = arith.constant 0 : i32
    return %arg0, %c0_i32 : i32, i32
  }
  func.func @transform_10(%arg0: i32) -> (i32, i32) {
    %c0_i32 = arith.constant 0 : i32
    %c0_i32_0 = arith.constant 0 : i32
    return %arg0, %c0_i32 : i32, i32
  }
}

</mosaic_0001>

<llo_original>
// kernel: tpu_custom_call.1
$region0: #{tpu_custom_call.1}
  #allocation0 [shape = 'u32[]', space=smem, size = 0x4, offset = 0x4, fixed_abs, tag = 'smem constant byte address 0x4 - core index']
  #allocation1 [shape = 'u32[72,128]{1,0:T(1,128)}', space=vmem, size = 0x9000, scoped, tag = 'internal scratch']
  %s0 = inlined_call_operand.vmem [shape: f32[8,32], index: 0, kind: input, shape index: {}]
  %s1 = inlined_call_operand.vmem [shape: f32[8,32], index: 1, kind: input, shape index: {}]
  %s2 = inlined_call_operand.vmem [shape: f32[8,1], index: 2, kind: input, shape index: {}]
  %s3 = inlined_call_operand.vmem [shape: f32[32,16], index: 3, kind: input, shape index: {}]
  %s4 = inlined_call_operand.vmem [shape: f32[32,16], index: 4, kind: input, shape index: {}]
  %s5 = inlined_call_operand.vmem [shape: f32[32,32], index: 5, kind: input, shape index: {}]
  %s6 = inlined_call_operand.vmem [shape: f32[32,32], index: 6, kind: input, shape index: {}]
  %s7 = inlined_call_operand.vmem [shape: f32[4,16], index: 7, kind: input, shape index: {}]
  %s8 = inlined_call_operand.vmem [shape: f32[3,32], index: 8, kind: input, shape index: {}]
  %s9 = inlined_call_operand.hbm [shape: f32[8,32], index: 9, kind: output, shape index: {0}]
  %s10 = inlined_call_operand.vmem [shape: f32[8,1], index: 10, kind: output, shape index: {1}]
  %11 = xla_tuple %s9, %s10
  %s12 = sld [smem:[#allocation0]]
  $region54: #{tpu_custom_call.1} parent=0
    _
  %s14 = ssub.s32 1, %s12
  %s15 = scalar_select 0, %s14, %s12
  $region1: #{tpu_custom_call.1} parent=0
    #allocation2 [shape = 'u8[4096]{0}', space=vmem, size = 0x1000, scoped, tag = 'output window, operand 0, single buffered']
    #allocation3 [shape = 's32[1]{0}', space=sflag, size = 0x4, scoped, tag = 'scoped memory for tpu_custom_call.1']
    %16 = vsyncpa [#allocation3], 0
    // Predicated region
    $region2: #{tpu_custom_call.1} parent=1 // pred_check
      _
    $region3: #{tpu_custom_call.1} parent=1 // pred_check_branch
      %18 = sbr.rel (0) target = $region5
    $region4: #{tpu_custom_call.1} parent=1 // pred_region
      _
    $region5: #{tpu_custom_call.1} parent=1 // pred_fallthru
      _
    // Predicated region
    $region6: #{tpu_custom_call.1} parent=1 // pred_check
      _
    $region7: #{tpu_custom_call.1} parent=1 // pred_check_branch
      %20 = sbr.rel (0) target = $region9
    $region8: #{tpu_custom_call.1} parent=1 // pred_region
      _
    $region9: #{tpu_custom_call.1} parent=1 // pred_fallthru
      _
    // Predicated region
    $region10: #{tpu_custom_call.1} parent=1 // pred_check
      _
    $region11: #{tpu_custom_call.1} parent=1 // pred_check_branch
      %22 = sbr.rel (0) target = $region13
    $region12: #{tpu_custom_call.1} parent=1 // pred_region
      _
    $region13: #{tpu_custom_call.1} parent=1 // pred_fallthru
      _
    // Predicated region
    $region14: #{tpu_custom_call.1} parent=1 // pred_check
      _
    $region15: #{tpu_custom_call.1} parent=1 // pred_check_branch
      %24 = sbr.rel (0) target = $region17
    $region16: #{tpu_custom_call.1} parent=1 // pred_region
      _
    $region17: #{tpu_custom_call.1} parent=1 // pred_fallthru
      _
    // Predicated region
    $region18: #{tpu_custom_call.1} parent=1 // pred_check
      _
    $region19: #{tpu_custom_call.1} parent=1 // pred_check_branch
      %26 = sbr.rel (0) target = $region21
    $region20: #{tpu_custom_call.1} parent=1 // pred_region
      _
    $region21: #{tpu_custom_call.1} parent=1 // pred_fallthru
      _
    // Predicated region
    $region22: #{tpu_custom_call.1} parent=1 // pred_check
      _
    $region23: #{tpu_custom_call.1} parent=1 // pred_check_branch
      %28 = sbr.rel (0) target = $region25
    $region24: #{tpu_custom_call.1} parent=1 // pred_region
      _
    $region25: #{tpu_custom_call.1} parent=1 // pred_fallthru
      _
    // Predicated region
    $region26: #{tpu_custom_call.1} parent=1 // pred_check
      _
    $region27: #{tpu_custom_call.1} parent=1 // pred_check_branch
      %30 = sbr.rel (0) target = $region29
    $region28: #{tpu_custom_call.1} parent=1 // pred_region
      _
    $region29: #{tpu_custom_call.1} parent=1 // pred_fallthru
      _
    // Predicated region
    $region30: #{tpu_custom_call.1} parent=1 // pred_check
      _
    $region31: #{tpu_custom_call.1} parent=1 // pred_check_branch
      %32 = sbr.rel (0) target = $region33
    $region32: #{tpu_custom_call.1} parent=1 // pred_region
      _
    $region33: #{tpu_custom_call.1} parent=1 // pred_fallthru
      _
    // Predicated region
    $region34: #{tpu_custom_call.1} parent=1 // pred_check
      _
    $region35: #{tpu_custom_call.1} parent=1 // pred_check_branch
      %34 = sbr.rel (0) target = $region37
    $region36: #{tpu_custom_call.1} parent=1 // pred_region
      _
    $region37: #{tpu_custom_call.1} parent=1 // pred_fallthru
      _
    %v35 = vld [vmem:[%s0] sm:$0xff]
    %v36 = vld [vmem:[%s1] sm:$0xff]
    %v37 = vld [vmem:[%s2] sm:$0xff]
    %v38 = vld [vmem:[%s7] sm:$0x1]
    %v39 = vld [vmem:[%s7 + $0x1] sm:$0x1]
    %v40 = vld [vmem:[%s7 + $0x2] sm:$0x1]
    %v41 = vld [vmem:[%s7 + $0x3] sm:$0x1]
    %v42 = vld [vmem:[%s8] sm:$0x1]
    %v43 = vld [vmem:[%s8 + $0x1] sm:$0x1]
    %v44 = vld [vmem:[%s8 + $0x2] sm:$0x1]
    %v45 = vld [vmem:[%s3] sm:$0xff]
    %v46 = vld [vmem:[%s3 + $0x8] sm:$0xff]
    %v47 = vld [vmem:[%s3 + $0x10] sm:$0xff]
    %v48 = vld [vmem:[%s3 + $0x18] sm:$0xff]
    %v49 = vld [vmem:[%s4] sm:$0xff]
    %v50 = vld [vmem:[%s4 + $0x8] sm:$0xff]
    %v51 = vld [vmem:[%s4 + $0x10] sm:$0xff]
    %v52 = vld [vmem:[%s4 + $0x18] sm:$0xff]
    %vm53 = vcmask 261120
    %v55 = vsel %vm53, %v36, 0
    %57 = vmatpush.msra.mxu0 0.0
    %58 = vmatpush.msra.mxu0 0.0
    %59 = vmatpush.msra.mxu0 0.0
    %60 = vmatpush.msra.mxu0 0.0
    %61 = vmatpush.msra.mxu0 0.0
    %62 = vmatpush.msra.mxu0 0.0
    %63 = vmatpush.msra.mxu0 0.0
    %64 = vmatpush.msra.mxu0 0.0
    %65 = vmatpush.msra.mxu0 0.0
    %66 = vmatpush.msra.mxu0 0.0
    %67 = vmatpush.msra.mxu0 0.0
    %68 = vmatpush.msra.mxu0 0.0
    %69 = vmatpush.msra.mxu0 %v52
    %70 = vmatpush.msra.mxu0 %v51
    %71 = vmatpush.msra.mxu0 %v50
    %72 = vmatpush.msra.mxu0 %v49
    %73 = vmatmul.f32.gmra.mxu0 %v55
    %v74 = vpop.f32.mrf.mxu0
    %v75 = vadd.f32 0.0, %v74
    %76 = vdwg.mxu0
    %v78 = vsel %vm53, %v35, 0
    %80 = vmatpush.msra.mxu0 0.0
    %81 = vmatpush.msra.mxu0 0.0
    %82 = vmatpush.msra.mxu0 0.0
    %83 = vmatpush.msra.mxu0 0.0
    %84 = vmatpush.msra.mxu0 0.0
    %85 = vmatpush.msra.mxu0 0.0
    %86 = vmatpush.msra.mxu0 0.0
    %87 = vmatpush.msra.mxu0 0.0
    %88 = vmatpush.msra.mxu0 0.0
    %89 = vmatpush.msra.mxu0 0.0
    %90 = vmatpush.msra.mxu0 0.0
    %91 = vmatpush.msra.mxu0 0.0
    %92 = vmatpush.msra.mxu0 %v48
    %93 = vmatpush.msra.mxu0 %v47
    %94 = vmatpush.msra.mxu0 %v46
    %95 = vmatpush.msra.mxu0 %v45
    %96 = vmatmul.f32.gmra.mxu0 %v78
    %v97 = vpop.f32.mrf.mxu0
    %v98 = vadd.f32 %v75, %v97
    %99 = vdwg.mxu0
    %101 = vset.pattern.permute.xlu0 0
    %102 = vperm.xlu0 %101, %v37
    %v103 = vpop.permute.xlu0 %102
    %v105 = vperm.slane %v38, 0
    %v106 = vmul.f32 %v103, %v105
    %v107 = vadd.f32 %v98, %v106
    %v108 = vperm.slane %v39, 0
    %v109 = vadd.f32 %v107, %v108
    %v110 = vmul.f32 %v109, 0.5
    %v111 = vmul.f32 %v109, 0.70710677
    %v112 = vmul.f32 %v111, %v111
    %v113 = vmin.f32 16.0, %v112
    %v114 = vmul.f32 %v113, 2.1237322e-06
    %v115 = vadd.f32 %v114, 0.00028619796
    %v116 = vmul.f32 %v113, %v115
    %v117 = vadd.f32 %v116, 0.0036580483
    %v118 = vmul.f32 %v113, %v117
    %v119 = vadd.f32 %v118, 0.05243302
    %v120 = vmul.f32 %v113, %v119
    %v121 = vadd.f32 %v120, 0.18741608
    %v122 = vmul.f32 %v113, %v121
    %v123 = vadd.f32 %v122, 1.1283791
    %v124 = vmul.f32 %v111, %v123
    %v125 = vmul.f32 %v113, 3.8918573e-05
    %v126 = vadd.f32 %v125, 0.001143296
    %v127 = vmul.f32 %v113, %v126
    %v128 = vadd.f32 %v127, 0.014752088
    %v129 = vmul.f32 %v113, %v128
    %v130 = vadd.f32 %v129, 0.112945676
    %v131 = vmul.f32 %v113, %v130
    %v132 = vadd.f32 %v131, 0.4994258
    %v133 = vmul.f32 %v113, %v132
    %v134 = vadd.f32 %v133, 1.0
    %v135 = vrcp.pop %v134
    %v136 = vmul.f32 %v134, %v135
    %v137 = vsub.f32 1.0, %v136
    %v138 = vmul.f32 %v135, %v137
    %v139 = vadd.f32 %v135, %v138
    %vm140 = vweird.f32 %v134
    %vm141 = vweird.f32 %v135
    %vm142 = vmor %vm140, %vm141
    %v143 = vsel %vm142, %v135, %v139
    %v144 = vand.u32 2147483647, %v134
    %vm145 = vcmp.eq.f32.partialorder %v144, 8.507059e+37
    %v146 = vand.u32 %v134, 2147483648
    %v147 = vor.u32 1.1754944e-38, %v146
    %v148 = vsel %vm145, %v147, %v143
    %v149 = vmul.f32 %v124, %v148
    %v150 = vmin.f32 %v149, 1.0
    %v151 = vmax.f32 %v150, -1.0
    %v152 = vadd.f32 %v151, 1.0
    %v153 = vmul.f32 %v110, %v152
    %v154 = vperm.slane %v40, 0
    %v155 = vmul.f32 %v153, %v154
    %vm156 = vcmask 130048
    %v157 = vsel %vm156, %v155, 0.0
    %158 = vadd.xlane.f32.xlu0 %v157
    %v159 = vpop.xlane.xlu0 %158
    %v160 = vperm.slane %v41, 0
    %v161 = vadd.f32 %v159, %v160
    %v162 = vmul.f32 %v161, 0.5
    %v163 = vtanh.pop %v162
    %v164 = vadd.f32 %v163, 1.0
    %v165 = vmul.f32 %v164, 0.5
    %v166 = vmul.f32 %v165, 0.3
    %v167 = vadd.f32 %v166, 0.7
    %v168 = vsub.f32 1.0, %v167
    %170 = vset.pattern.permute.xlu0 0
    %171 = vperm.xlu0 %170, %v167
    %v172 = vpop.permute.xlu0 %171
    %v174 = vmul.f32 %v172, %v35
    %v175 = vld [vmem:[%s5] sm:$0xff]
    %v176 = vld [vmem:[%s5 + $0x8] sm:$0xff]
    %v177 = vld [vmem:[%s5 + $0x10] sm:$0xff]
    %v178 = vld [vmem:[%s5 + $0x18] sm:$0xff]
    %180 = vset.pattern.permute.xlu0 0
    %181 = vperm.xlu0 %180, %v168
    %v182 = vpop.permute.xlu0 %181
    %v184 = vmul.f32 %v182, %v36
    %v185 = vld [vmem:[%s6] sm:$0xff]
    %v186 = vld [vmem:[%s6 + $0x8] sm:$0xff]
    %v187 = vld [vmem:[%s6 + $0x10] sm:$0xff]
    %v188 = vld [vmem:[%s6 + $0x18] sm:$0xff]
    %v190 = vsel %vm53, %v184, 0
    %192 = vmatpush.msra.mxu0 0.0
    %193 = vmatpush.msra.mxu0 0.0
    %194 = vmatpush.msra.mxu0 0.0
    %195 = vmatpush.msra.mxu0 0.0
    %196 = vmatpush.msra.mxu0 0.0
    %197 = vmatpush.msra.mxu0 0.0
    %198 = vmatpush.msra.mxu0 0.0
    %199 = vmatpush.msra.mxu0 0.0
    %200 = vmatpush.msra.mxu0 0.0
    %201 = vmatpush.msra.mxu0 0.0
    %202 = vmatpush.msra.mxu0 0.0
    %203 = vmatpush.msra.mxu0 0.0
    %204 = vmatpush.msra.mxu0 %v188
    %205 = vmatpush.msra.mxu0 %v187
    %206 = vmatpush.msra.mxu0 %v186
    %207 = vmatpush.msra.mxu0 %v185
    %208 = vmatmul.f32.gmra.mxu0 %v190
    %v209 = vpop.f32.mrf.mxu0
    %v210 = vadd.f32 0.0, %v209
    %211 = vdwg.mxu0
    %v213 = vsel %vm53, %v174, 0
    %215 = vmatpush.msra.mxu0 0.0
    %216 = vmatpush.msra.mxu0 0.0
    %217 = vmatpush.msra.mxu0 0.0
    %218 = vmatpush.msra.mxu0 0.0
    %219 = vmatpush.msra.mxu0 0.0
    %220 = vmatpush.msra.mxu0 0.0
    %221 = vmatpush.msra.mxu0 0.0
    %222 = vmatpush.msra.mxu0 0.0
    %223 = vmatpush.msra.mxu0 0.0
    %224 = vmatpush.msra.mxu0 0.0
    %225 = vmatpush.msra.mxu0 0.0
    %226 = vmatpush.msra.mxu0 0.0
    %227 = vmatpush.msra.mxu0 %v178
    %228 = vmatpush.msra.mxu0 %v177
    %229 = vmatpush.msra.mxu0 %v176
    %230 = vmatpush.msra.mxu0 %v175
    %231 = vmatmul.f32.gmra.mxu0 %v213
    %v232 = vpop.f32.mrf.mxu0
    %v233 = vadd.f32 %v210, %v232
    %234 = vdwg.mxu0
    %v235 = vperm.slane %v42, 0
    %v236 = vadd.f32 %v233, %v235
    %v237 = vsel %vm53, %v236, 0.0
    %238 = vadd.xlane.f32.xlu0 %v237
    %v239 = vpop.xlane.xlu0 %238
    %v240 = vrcp.pop 32.0
    %v241 = vmul.f32 32.0, %v240
    %v242 = vsub.f32 1.0, %v241
    %v243 = vmul.f32 %v240, %v242
    %v244 = vadd.f32 %v240, %v243
    %vm245 = vweird.f32 %v240
    %v246 = vsel %vm245, %v240, %v244
    %v247 = vmul.f32 %v239, %v246
    %v248 = vmul.f32 %v236, %v236
    %v249 = vsel %vm53, %v248, 0.0
    %250 = vadd.xlane.f32.xlu0 %v249
    %v251 = vpop.xlane.xlu0 %250
    %v252 = vmul.f32 %v251, %v246
    %v253 = vmul.f32 %v247, %v247
    %v254 = vsub.f32 %v252, %v253
    %v255 = vsub.f32 %v236, %v247
    %v256 = vadd.f32 %v254, 1e-05
    %v257 = vrsqrt.pop %v256
    %v258 = vmul.f32 %v257, %v256
    %v259 = vmul.f32 %v258, %v257
    %v260 = vmul.f32 0.5, %v259
    %v261 = vsub.f32 1.5, %v260
    %v262 = vmul.f32 %v257, %v261
    %vm263 = vweird.f32 %v256
    %vm264 = vweird.f32 %v257
    %vm265 = vmor %vm263, %vm264
    %v266 = vsel %vm265, %v257, %v262
    %v267 = vmul.f32 %v255, %v266
    %v268 = vperm.slane %v43, 0
    %v269 = vmul.f32 %v267, %v268
    %v270 = vperm.slane %v44, 0
    %v271 = vadd.f32 %v269, %v270
    %272 = vst.msk [vmem:[#allocation2] sm:$0xff] %vm53, %v271
    %vm273 = vcmask 7168
    %274 = vst.msk [vmem:[%s10] sm:$0xff] %vm273, %v167
    // Predicated region
    $region38: #{tpu_custom_call.1} parent=1 // pred_check
      _
    $region39: #{tpu_custom_call.1} parent=1 // pred_check_branch
      %276 = sbr.rel (0) target = $region41
    $region40: #{tpu_custom_call.1} parent=1 // pred_region
      %278 = vsyncadd [#allocation3], 0
      %s280 = sshll.u32 [#allocation2], 4
      %s281 = int_to_ptr.vmem [resolvable:$true] %s280
      %s282 = sshll.u32 %s9, 4
      %s283 = int_to_ptr.hbm [resolvable:$true] %s282
      %285 = dma.vmem_to_hbm [thread:$0]  %s281, 128, %s283, [#allocation3]
    $region41: #{tpu_custom_call.1} parent=1 // pred_fallthru
      _
    // Predicated region
    $region42: #{tpu_custom_call.1} parent=1 // pred_check
      _
    $region43: #{tpu_custom_call.1} parent=1 // pred_check_branch
      %287 = sbr.rel (0) target = $region45
    $region44: #{tpu_custom_call.1} parent=1 // pred_region
      _
    $region45: #{tpu_custom_call.1} parent=1 // pred_fallthru
      _
    // Predicated region
    $region46: #{tpu_custom_call.1} parent=1 // pred_check
      _
    $region47: #{tpu_custom_call.1} parent=1 // pred_check_branch
      %289 = sbr.rel (0) target = $region49
    $region48: #{tpu_custom_call.1} parent=1 // pred_region
      %291 = dma.done [#allocation3], 128
    $region49: #{tpu_custom_call.1} parent=1 // pred_fallthru
      _
    // Predicated region
    $region50: #{tpu_custom_call.1} parent=1 // pred_check
      _
    $region51: #{tpu_custom_call.1} parent=1 // pred_check_branch
      %293 = sbr.rel (0) target = $region53
    $region52: #{tpu_custom_call.1} parent=1 // pred_region
      _
    $region53: #{tpu_custom_call.1} parent=1 // pred_fallthru
      _
    %294 = vsyncpa [#allocation3], 1

</llo_original>
